<compile_context>
chip_gen: v7x
topology: tpu7x:2x2x1
jax: 0.10.0
libtpu: 0.0.40
codegen_flags: <defaults>
</compile_context>

<pallas_src>
import jax
import jax.numpy as jnp
from jax.experimental import pallas as pl
from jax.experimental.pallas import tpu as pltpu

_LANES = 128      # vreg lane width
_SUBLANES = 8     # vreg sublane count (f32)


def _round_up(x: int, m: int) -> int:
    return ((x + m - 1) // m) * m


def discriminator_kernel(x_ref, w1_ref, b1_ref, w2_ref, b2_ref, o_ref):
    """One packed batch tile.

    x_ref:  (tp, 128)  packed input tile (row r holds 4 original rows)
    w1_ref: (128, 128) block-diagonal layer-1 weight (VMEM resident)
    b1_ref: (1, 128)   4x-tiled layer-1 bias       (VMEM resident)
    w2_ref: (128, 8)   segment-select layer-2 weight, cols 4..7 are zero
    b2_ref: (1, 1)     layer-2 bias scalar (SMEM)
    o_ref:  (8, tp)    lane-dense output tile; [j, r] = result of row 4*r + j
    """
    # Layer 1: lane-dense (tp,128) @ (128,128) on the MXU, f32 accumulate.
    h = jnp.dot(x_ref[...], w1_ref[...], preferred_element_type=jnp.float32)
    h = jnp.tanh(h + b1_ref[...])                                   # (tp, 128)

    # Layer 2: per-32-lane segmented reduce as a skinny matmul, then a tiny
    # (tp, 8) -> (8, tp) relayout so sigmoid + store are lane-dense.
    z = jnp.dot(h, w2_ref[...], preferred_element_type=jnp.float32)  # (tp, 8)
    zt = z.T                                                         # (8, tp)
    o_ref[...] = jax.nn.sigmoid(zt + b2_ref[0, 0])


def discriminator_forward(dec, w1, b1, w2, b2, *, max_block_rows: int = 4096):
    """Forward pass of Discriminator (PyTorch nn.Linear weight layout).

    dec: (B, D) f32;  w1: (D, D) = (out, in);  b1: (D,);  w2: (1, D);  b2: (1,)
    returns: (B, 1) f32
    """
    dec = jnp.asarray(dec, jnp.float32)
    B, D = dec.shape
    if _LANES % D != 0:
        # TODO(synk): general-d path (plain (B, D) tiling) when 128 % d != 0.
        raise NotImplementedError("lane-dense packing assumes 128 % d == 0")
    P = _LANES // D                       # original rows packed per lane row (4)

    # ---- packed-row tile size (tp) --------------------------------------
    R = pl.cdiv(B, P)                     # packed rows needed
    if R <= _LANES:
        tp = _round_up(R, _SUBLANES)      # single grid step; block == full array
    else:
        tp = min(max(_LANES, max_block_rows // P), _round_up(R, _LANES))
        # keep >= 4 grid steps when the batch allows (v7x megacore + prefetch)
        if R >= 4 * _LANES:
            tp = min(tp, _round_up(pl.cdiv(R, 4), _LANES))
        # prefer a tile that divides R: skips the wrapper-side pad copy below
        if R % tp:
            for cand in range(tp, _LANES - 1, -_LANES):
                if R % cand == 0:
                    tp = cand
                    break
    r_pad = _round_up(R, tp)
    grid = (r_pad // tp,)

    # ---- free (contiguous, row-major) lane-dense packing of dec ---------
    rows_needed = r_pad * P
    if rows_needed != B:
        # TODO(synk): a masked tail block would avoid this full-array copy;
        # the divisor search above already skips it for most batch sizes.
        dec = jnp.pad(dec, ((0, rows_needed - B), (0, 0)))
    x_p = dec.reshape(r_pad, P * D)                              # (r_pad, 128)

    # ---- weight prep (tiny; precompute once in a real model) ------------
    w1 = jnp.asarray(w1, jnp.float32).reshape(D, D)
    b1 = jnp.asarray(b1, jnp.float32).reshape(1, D)
    w2 = jnp.asarray(w2, jnp.float32).reshape(1, D)
    b2 = jnp.asarray(b2, jnp.float32).reshape(1, 1)
    eye_p = jnp.eye(P, dtype=jnp.float32)
    w1_bd = jnp.kron(eye_p, w1.T)                                # (128, 128)
    b1_t = jnp.tile(b1, (1, P))                                  # (1, 128)
    w2_seg = jnp.pad(jnp.kron(eye_p, w2.T),                      # (128, 8)
                     ((0, 0), (0, _SUBLANES - P)))

    cost = pl.CostEstimate(
        flops=2 * B * D * D + 2 * B * D,
        transcendentals=B * D + B,
        bytes_accessed=B * D * 4 + (128 * 128 + 128 + 128 * 8 + 1) * 4 + B * 4,
    )

    out = pl.pallas_call(
        discriminator_kernel,
        out_shape=jax.ShapeDtypeStruct((_SUBLANES, r_pad), jnp.float32),
        grid=grid,
        in_specs=[
            # packed batch tile marches over the grid
            pl.BlockSpec((tp, _LANES), lambda i: (i, 0)),
            # weights/biases: constant block index -> VMEM resident across grid
            pl.BlockSpec((_LANES, _LANES), lambda i: (0, 0)),
            pl.BlockSpec((1, _LANES), lambda i: (0, 0)),
            pl.BlockSpec((_LANES, _SUBLANES), lambda i: (0, 0)),
            # scalar layer-2 bias lives in SMEM (no padded VMEM tile)
            pl.BlockSpec((1, 1), lambda i: (0, 0),
                         memory_space=pltpu.MemorySpace.SMEM),
        ],
        out_specs=pl.BlockSpec((_SUBLANES, tp), lambda i: (0, i)),
        compiler_params=pltpu.CompilerParams(
            dimension_semantics=("parallel",)),
        cost_estimate=cost,
    )(x_p, w1_bd, b1_t, w2_seg, b2)

    # un-permute: out[j, r] is the result for original row P*r + j.
    return out[:P].T.reshape(-1)[:B].reshape(B, 1)


def reference_forward(dec, w1, b1, w2, b2):
    h = jnp.tanh(dec @ w1.T + b1.reshape(1, -1))
    return jax.nn.sigmoid(h @ w2.reshape(1, -1).T + b2.reshape(1, 1))


if __name__ == "__main__":
    D = 32                       # Discriminator(d=32)
    B_multi, B_ragged = 2048, 10

    key = jax.random.PRNGKey(0)
    k_x, k_w1, k_b1, k_w2, k_b2 = jax.random.split(key, 5)

    dec = jax.random.normal(k_x, (B_multi, D), dtype=jnp.float32)

    # nn.Linear-style params: weight (out, in), U(-1/sqrt(fan_in), 1/sqrt(fan_in))
    bound = 1.0 / float(D) ** 0.5
    w1 = jax.random.uniform(k_w1, (D, D), jnp.float32, -bound, bound)
    b1 = jax.random.uniform(k_b1, (D,), jnp.float32, -bound, bound)
    w2 = jax.random.uniform(k_w2, (1, D), jnp.float32, -bound, bound)
    b2 = jax.random.uniform(k_b2, (1,), jnp.float32, -bound, bound)

    # Tolerance covers XLA's default (bf16-pass) f32 matmul in the reference;
    # the kernel accumulates in f32 and typically matches to ~1e-6.
    tol = dict(atol=2e-3, rtol=2e-3)

    # 1) Multi-step grid: B=2048 -> 4 parallel grid steps, no padding.
    out = jax.block_until_ready(discriminator_forward(dec, w1, b1, w2, b2))
    ref = reference_forward(dec, w1, b1, w2, b2)
    assert out.shape == (B_multi, 1), out.shape
    assert jnp.allclose(out, ref, **tol), float(jnp.max(jnp.abs(out - ref)))

    # 2) Small ragged batch: exercises the pad / single-step path.
    dec_s = dec[:B_ragged]
    out_s = jax.block_until_ready(discriminator_forward(dec_s, w1, b1, w2, b2))
    ref_s = reference_forward(dec_s, w1, b1, w2, b2)
    assert out_s.shape == (B_ragged, 1), out_s.shape
    assert jnp.allclose(out_s, ref_s, **tol), float(jnp.max(jnp.abs(out_s - ref_s)))

    print("KERNEL_OK")
</pallas_src>

<mosaic_0001>
module attributes {stable_mosaic.version = 11 : i64} {
  func.func @discriminator_kernel(%arg0: i32, %arg1: memref<128x128xf32, #tpu.memory_space<vmem>>, %arg2: memref<128x128xf32, #tpu.memory_space<vmem>>, %arg3: memref<1x128xf32, #tpu.memory_space<vmem>>, %arg4: memref<128x8xf32, #tpu.memory_space<vmem>>, %arg5: memref<1x1xf32, #tpu.memory_space<smem>>, %arg6: memref<8x128xf32, #tpu.memory_space<vmem>>) attributes {dimension_semantics = [#tpu.dimension_semantics<parallel>], iteration_bounds = array<i64: 4>, scalar_prefetch = 0 : i64, scratch_operands = 0 : i64, tpu.core_type = #tpu.core_type<tc>, window_params = [{transform_indices = @transform_0, window_bounds = array<i64: 128, 128>}, {pipeline_mode = #tpu.pipeline_mode<synchronous>, transform_indices = @transform_1, window_bounds = array<i64: 128, 128>}, {pipeline_mode = #tpu.pipeline_mode<synchronous>, transform_indices = @transform_2, window_bounds = array<i64: 1, 128>}, {pipeline_mode = #tpu.pipeline_mode<synchronous>, transform_indices = @transform_3, window_bounds = array<i64: 128, 8>}, {transform_indices = @transform_4, window_bounds = array<i64: 1, 1>}, {transform_indices = @transform_5, window_bounds = array<i64: 8, 128>}]} {
    %c0 = arith.constant 0 : index
    %c0_0 = arith.constant 0 : index
    %0 = vector.load %arg1[%c0, %c0_0] : memref<128x128xf32, #tpu.memory_space<vmem>>, vector<128x128xf32>
    %c0_1 = arith.constant 0 : index
    %c0_2 = arith.constant 0 : index
    %1 = vector.load %arg2[%c0_1, %c0_2] : memref<128x128xf32, #tpu.memory_space<vmem>>, vector<128x128xf32>
    %cst = arith.constant dense<0.000000e+00> : vector<128x128xf32>
    %2 = tpu.matmul %0, %1, %cst {dimension_numbers = #tpu.dot_dimension_numbers<[1], [0], [0], [1], [0, 0, 1, 1], [], []>} : vector<128x128xf32>, vector<128x128xf32>, vector<128x128xf32> -> vector<128x128xf32>
    %c0_3 = arith.constant 0 : index
    %c0_4 = arith.constant 0 : index
    %3 = vector.load %arg3[%c0_3, %c0_4] : memref<1x128xf32, #tpu.memory_space<vmem>>, vector<1x128xf32>
    %4 = vector.broadcast %3 : vector<1x128xf32> to vector<128x128xf32>
    %5 = arith.addf %2, %4 : vector<128x128xf32>
    %6 = math.tanh %5 : vector<128x128xf32>
    %c0_5 = arith.constant 0 : index
    %c0_6 = arith.constant 0 : index
    %7 = vector.load %arg4[%c0_5, %c0_6] : memref<128x8xf32, #tpu.memory_space<vmem>>, vector<128x8xf32>
    %cst_7 = arith.constant dense<0.000000e+00> : vector<128x8xf32>
    %8 = tpu.matmul %6, %7, %cst_7 {dimension_numbers = #tpu.dot_dimension_numbers<[1], [0], [0], [1], [0, 0, 1, 1], [], []>} : vector<128x128xf32>, vector<128x8xf32>, vector<128x8xf32> -> vector<128x8xf32>
    %9 = tpu.transpose %8, [1, 0] : vector<128x8xf32> -> vector<8x128xf32>
    %c0_8 = arith.constant 0 : index
    %c0_9 = arith.constant 0 : index
    %10 = memref.load %arg5[%c0_8, %c0_9] : memref<1x1xf32, #tpu.memory_space<smem>>
    %11 = vector.broadcast %10 : f32 to vector<8x128xf32>
    %12 = arith.addf %9, %11 : vector<8x128xf32>
    %13 = arith.negf %12 : vector<8x128xf32>
    %14 = math.exp %13 : vector<8x128xf32>
    %cst_10 = arith.constant 1.000000e+00 : f32
    %15 = vector.broadcast %cst_10 : f32 to vector<8x128xf32>
    %16 = arith.addf %15, %14 : vector<8x128xf32>
    %17 = arith.divf %15, %16 : vector<8x128xf32>
    %c0_11 = arith.constant 0 : index
    %c0_12 = arith.constant 0 : index
    %18 = vector.load %arg6[%c0_11, %c0_12] : memref<8x128xf32, #tpu.memory_space<vmem>>, vector<8x128xf32>
    tpu.vector_store %arg6[%c0_11, %c0_12], %17 {strides = array<i32>} : memref<8x128xf32, #tpu.memory_space<vmem>>, vector<8x128xf32>,
    return
  }
  func.func @transform_0(%arg0: i32) -> (i32, i32) {
    %c0_i32 = arith.constant 0 : i32
    %c0_i32_0 = arith.constant 0 : i32
    return %arg0, %c0_i32 : i32, i32
  }
  func.func @transform_1(%arg0: i32) -> (i32, i32) {
    %c0_i32 = arith.constant 0 : i32
    %c0_i32_0 = arith.constant 0 : i32
    %c0_i32_1 = arith.constant 0 : i32
    return %c0_i32, %c0_i32_0 : i32, i32
  }
  func.func @transform_2(%arg0: i32) -> (i32, i32) {
    %c0_i32 = arith.constant 0 : i32
    %c0_i32_0 = arith.constant 0 : i32
    %c0_i32_1 = arith.constant 0 : i32
    return %c0_i32, %c0_i32_0 : i32, i32
  }
  func.func @transform_3(%arg0: i32) -> (i32, i32) {
    %c0_i32 = arith.constant 0 : i32
    %c0_i32_0 = arith.constant 0 : i32
    %c0_i32_1 = arith.constant 0 : i32
    return %c0_i32, %c0_i32_0 : i32, i32
  }
  func.func @transform_4(%arg0: i32) -> (i32, i32) {
    %c0_i32 = arith.constant 0 : i32
    %c0_i32_0 = arith.constant 0 : i32
    %c0_i32_1 = arith.constant 0 : i32
    return %c0_i32, %c0_i32_0 : i32, i32
  }
  func.func @transform_5(%arg0: i32) -> (i32, i32) {
    %c0_i32 = arith.constant 0 : i32
    %c0_i32_0 = arith.constant 0 : i32
    return %c0_i32, %arg0 : i32, i32
  }
}

</mosaic_0001>

<llo_original>
// kernel: tpu_custom_call.1
$region0: #{tpu_custom_call.1}
  #allocation0 [shape = 'u32[]', space=smem, size = 0x4, offset = 0x4, fixed_abs, tag = 'smem constant byte address 0x4 - core index']
  #allocation1 [shape = 'u32[144,128]{1,0:T(1,128)}', space=vmem, size = 0x12000, scoped, tag = 'internal scratch']
  #allocation2 [shape = 'f32[1,1]{1,0:T(1,128)S(6)}', space=smem, size = 0x200, scoped, tag = 'scoped memory for tpu_custom_call.1']
  %s0 = inlined_call_operand.hbm [shape: f32[512,128], index: 0, kind: input, shape index: {}]
  %s1 = inlined_call_operand.vmem [shape: f32[128,128], index: 1, kind: input, shape index: {}]
  %s2 = inlined_call_operand.vmem [shape: f32[1,128], index: 2, kind: input, shape index: {}]
  %s3 = inlined_call_operand.vmem [shape: f32[128,8], index: 3, kind: input, shape index: {}]
  %s4 = inlined_call_operand.<no memory space> [shape: f32[1,1], index: 4, kind: input, shape index: {}]
  %s5 = inlined_call_operand.hbm [shape: f32[8,512], index: 5, kind: output, shape index: {}]
  %s6 = sld [smem:[#allocation0]]
  $region57: #{tpu_custom_call.1} parent=0
    _
  %s8 = ssub.s32 1, %s6
  %s9 = scalar_select 0, %s8, %s6
  %10 = sst [smem:[#allocation2]] %s4
  $region1: #{tpu_custom_call.1} parent=0
    #allocation3 [shape = 'u8[131072]{0}', space=vmem, size = 0x20000, scoped, tag = 'input window, operand 0']
    #allocation4 [shape = 's32[2]{0}', space=sflag, size = 0x8, scoped, tag = 'scoped memory for tpu_custom_call.1']
    #allocation5 [shape = 's32[2]{0}', space=sflag, size = 0x8, scoped, tag = 'scoped memory for tpu_custom_call.1']
    #allocation6 [shape = 'u8[8192]{0}', space=vmem, size = 0x2000, scoped, tag = 'output window, operand 0']
    %11 = vsyncpa [#allocation4], 0
    %s12 = scalar_lea.sflag [#allocation4], 1
    %13 = vsyncpa %s12, 0
    %14 = vsyncpa [#allocation5], 0
    %s15 = scalar_lea.sflag [#allocation5], 1
    %16 = vsyncpa %s15, 0
    loop: start=0, step=1, limit=6
    $region2: #{tpu_custom_call.1} parent=1 // loop_pre_header
      _
    $region3: #{tpu_custom_call.1} parent=1 // loop_header
      %s18 = sphi 0, %s22
      %p19 = scmp.ge.s32.totalorder %s18, 6
      %s28 = sphi 0, %s30
      %s31 = sphi 0, %s28
      %s32 = sphi 0, %s31
      %s48 = sphi 0, %s32
      %s52 = sphi 0, %s52
      %s54 = sphi 0, %s52
      %s55 = sphi 0, %s54
      %s69 = sphi 0, %s55
      %s73 = sphi 0, %s73
      %s75 = sphi 0, %s73
      %s76 = sphi 0, %s75
      %s90 = sphi 0, %s76
      %s94 = sphi 0, %s94
      %s96 = sphi 0, %s94
      %s97 = sphi 0, %s96
      %s111 = sphi 0, %s97
      %s115 = sphi 0, %s115
      %s117 = sphi 0, %s115
      %s118 = sphi 0, %s117
      %s132 = sphi 0, %s118
      %s138 = sphi 0, %s140
      %s141 = sphi 0, %s138
      %s142 = sphi 0, %s141
      %s158 = sphi 0, %s142
    $region4: #{tpu_custom_call.1} parent=1 // loop_header_branch
      %21 = sbr.rel (%p19) target = $region8
    $region5: #{tpu_custom_call.1} parent=1 // loop_body
      %s23 = ssub.s32 %s18, 1
      %s24 = ssub.s32 %s18, 2
      %s25 = sadd.s32 %s18, 1
      %s26 = ssub.s32 %s18, %s25
      %p27 = scmp.eq.s32.totalorder %s26, 0
      %s29 = sadd.s32 %s28, 1
      %s30 = scalar_select %p27, %s28, %s29
      %p33 = pneg %p27
      %p34 = scmp.eq.s32.totalorder %s18, 3
      %p35 = por %p33, %p34
      %p36 = scmp.ne.s32.totalorder %s28, %s31
      %p37 = scmp.eq.s32.totalorder %s18, 0
      %p38 = por %p36, %p37
      %p39 = scmp.ne.s32.totalorder %s28, %s31
      %p40 = scmp.eq.s32.totalorder %s23, 3
      %p41 = por %p39, %p40
      %p42 = scmp.ne.s32.totalorder %s31, %s32
      %p43 = scmp.eq.s32.totalorder %s23, 0
      %p44 = por %p42, %p43
      %p45 = scmp.ne.s32.totalorder %s31, %s32
      %p46 = scmp.eq.s32.totalorder %s24, 3
      %p47 = por %p45, %p46
      %p49 = scmp.ne.s32.totalorder %s32, %s48
      %p50 = scmp.eq.s32.totalorder %s24, 0
      %p51 = por %p49, %p50
      %s53 = sadd.s32 %s52, 1
      %p56 = scmp.eq.s32.totalorder %s18, 3
      %p57 = scmp.ne.s32.totalorder %s52, %s54
      %p58 = scmp.eq.s32.totalorder %s18, 0
      %p59 = por %p57, %p58
      %p60 = scmp.ne.s32.totalorder %s52, %s54
      %p61 = scmp.eq.s32.totalorder %s23, 3
      %p62 = por %p60, %p61
      %p63 = scmp.ne.s32.totalorder %s54, %s55
      %p64 = scmp.eq.s32.totalorder %s23, 0
      %p65 = por %p63, %p64
      %p66 = scmp.ne.s32.totalorder %s54, %s55
      %p67 = scmp.eq.s32.totalorder %s24, 3
      %p68 = por %p66, %p67
      %p70 = scmp.ne.s32.totalorder %s55, %s69
      %p71 = scmp.eq.s32.totalorder %s24, 0
      %p72 = por %p70, %p71
      %s74 = sadd.s32 %s73, 1
      %p77 = scmp.eq.s32.totalorder %s18, 3
      %p78 = scmp.ne.s32.totalorder %s73, %s75
      %p79 = scmp.eq.s32.totalorder %s18, 0
      %p80 = por %p78, %p79
      %p81 = scmp.ne.s32.totalorder %s73, %s75
      %p82 = scmp.eq.s32.totalorder %s23, 3
      %p83 = por %p81, %p82
      %p84 = scmp.ne.s32.totalorder %s75, %s76
      %p85 = scmp.eq.s32.totalorder %s23, 0
      %p86 = por %p84, %p85
      %p87 = scmp.ne.s32.totalorder %s75, %s76
      %p88 = scmp.eq.s32.totalorder %s24, 3
      %p89 = por %p87, %p88
      %p91 = scmp.ne.s32.totalorder %s76, %s90
      %p92 = scmp.eq.s32.totalorder %s24, 0
      %p93 = por %p91, %p92
      %s95 = sadd.s32 %s94, 1
      %p98 = scmp.eq.s32.totalorder %s18, 3
      %p99 = scmp.ne.s32.totalorder %s94, %s96
      %p100 = scmp.eq.s32.totalorder %s18, 0
      %p101 = por %p99, %p100
      %p102 = scmp.ne.s32.totalorder %s94, %s96
      %p103 = scmp.eq.s32.totalorder %s23, 3
      %p104 = por %p102, %p103
      %p105 = scmp.ne.s32.totalorder %s96, %s97
      %p106 = scmp.eq.s32.totalorder %s23, 0
      %p107 = por %p105, %p106
      %p108 = scmp.ne.s32.totalorder %s96, %s97
      %p109 = scmp.eq.s32.totalorder %s24, 3
      %p110 = por %p108, %p109
      %p112 = scmp.ne.s32.totalorder %s97, %s111
      %p113 = scmp.eq.s32.totalorder %s24, 0
      %p114 = por %p112, %p113
      %s116 = sadd.s32 %s115, 1
      %p119 = scmp.eq.s32.totalorder %s18, 3
      %p120 = scmp.ne.s32.totalorder %s115, %s117
      %p121 = scmp.eq.s32.totalorder %s18, 0
      %p122 = por %p120, %p121
      %p123 = scmp.ne.s32.totalorder %s115, %s117
      %p124 = scmp.eq.s32.totalorder %s23, 3
      %p125 = por %p123, %p124
      %p126 = scmp.ne.s32.totalorder %s117, %s118
      %p127 = scmp.eq.s32.totalorder %s23, 0
      %p128 = por %p126, %p127
      %p129 = scmp.ne.s32.totalorder %s117, %s118
      %p130 = scmp.eq.s32.totalorder %s24, 3
      %p131 = por %p129, %p130
      %p133 = scmp.ne.s32.totalorder %s118, %s132
      %p134 = scmp.eq.s32.totalorder %s24, 0
      %p135 = por %p133, %p134
      %s136 = ssub.s32 %s18, %s25
      %p137 = scmp.eq.s32.totalorder %s136, 0
      %s139 = sadd.s32 %s138, 1
      %s140 = scalar_select %p137, %s138, %s139
      %p143 = pneg %p137
      %p144 = scmp.eq.s32.totalorder %s18, 3
      %p145 = por %p143, %p144
      %p146 = scmp.ne.s32.totalorder %s138, %s141
      %p147 = scmp.eq.s32.totalorder %s18, 0
      %p148 = por %p146, %p147
      %p149 = scmp.ne.s32.totalorder %s138, %s141
      %p150 = scmp.eq.s32.totalorder %s23, 3
      %p151 = por %p149, %p150
      %p152 = scmp.ne.s32.totalorder %s141, %s142
      %p153 = scmp.eq.s32.totalorder %s23, 0
      %p154 = por %p152, %p153
      %p155 = scmp.ne.s32.totalorder %s141, %s142
      %p156 = scmp.eq.s32.totalorder %s24, 3
      %p157 = por %p155, %p156
      %p159 = scmp.ne.s32.totalorder %s142, %s158
      %p160 = scmp.eq.s32.totalorder %s24, 0
      %p161 = por %p159, %p160
      %p162 = scmp.le.s32.totalorder 1, %s18
      %p163 = scmp.lt.s32.totalorder %s18, 5
      %p164 = pnand %p162, %p163
      %p165 = pneg %p164
      // Predicated region
      $region9: #{tpu_custom_call.1} parent=5 // pred_check
        _
      $region10: #{tpu_custom_call.1} parent=5 // pred_check_branch
        %167 = sbr.rel (%p164) target = $region12
      $region11: #{tpu_custom_call.1} parent=5 // pred_region
        %s168 = ssub.s32 %s18, 1
        // Predicated region
        $region13: #{tpu_custom_call.1} parent=11 // pred_check
          %p169 = pneg %p65
        $region14: #{tpu_custom_call.1} parent=11 // pred_check_branch
          %171 = sbr.rel (%p169) target = $region16
        $region15: #{tpu_custom_call.1} parent=11 // pred_region
          _
        $region16: #{tpu_custom_call.1} parent=11 // pred_fallthru
          _
        // Predicated region
        $region17: #{tpu_custom_call.1} parent=11 // pred_check
          %p172 = pneg %p86
        $region18: #{tpu_custom_call.1} parent=11 // pred_check_branch
          %174 = sbr.rel (%p172) target = $region20
        $region19: #{tpu_custom_call.1} parent=11 // pred_region
          _
        $region20: #{tpu_custom_call.1} parent=11 // pred_fallthru
          _
        // Predicated region
        $region21: #{tpu_custom_call.1} parent=11 // pred_check
          %p175 = pneg %p107
        $region22: #{tpu_custom_call.1} parent=11 // pred_check_branch
          %177 = sbr.rel (%p175) target = $region24
        $region23: #{tpu_custom_call.1} parent=11 // pred_region
          _
        $region24: #{tpu_custom_call.1} parent=11 // pred_fallthru
          _
        // Predicated region
        $region25: #{tpu_custom_call.1} parent=11 // pred_check
          %p178 = pneg %p128
        $region26: #{tpu_custom_call.1} parent=11 // pred_check_branch
          %180 = sbr.rel (%p178) target = $region28
        $region27: #{tpu_custom_call.1} parent=11 // pred_region
          _
        $region28: #{tpu_custom_call.1} parent=11 // pred_fallthru
          _
      $region12: #{tpu_custom_call.1} parent=5 // pred_fallthru
        _
      %p181 = scmp.lt.s32.totalorder %s18, 4
      // Predicated region
      $region29: #{tpu_custom_call.1} parent=5 // pred_check
        %p182 = pneg %p181
      $region30: #{tpu_custom_call.1} parent=5 // pred_check_branch
        %184 = sbr.rel (%p182) target = $region32
      $region31: #{tpu_custom_call.1} parent=5 // pred_region
        // Predicated region
        $region33: #{tpu_custom_call.1} parent=31 // pred_check
          %p185 = pneg %p38
        $region34: #{tpu_custom_call.1} parent=31 // pred_check_branch
          %187 = sbr.rel (%p185) target = $region36
        $region35: #{tpu_custom_call.1} parent=31 // pred_region
          %s188 = sand.u32 %s28, 1
          %s189 = scalar_lea.sflag [#allocation4], %s188
          %s190 = sand.u32 %s28, 1
          %s191 = smul.addr %s190, 128
          %s192 = scalar_lea.vmem [#allocation3], %s191
          %s193 = smul.u32 16, %s18
          %s195 = ssub.s32 2048, 2048
          %196 = vsyncadd %s189, %s195
          %s197 = smul.addr %s193, 128
          %s198 = scalar_lea.hbm %s0, %s197
          %s199 = sshll.u32 %s192, 4
          %s200 = int_to_ptr.vmem [resolvable:$true] %s199
          %205 = dma.hbm_to_vmem [thread:$0]  %s198, 2048, %s200, %s189, 128, 128, 8
        $region36: #{tpu_custom_call.1} parent=31 // pred_fallthru
          _
      $region32: #{tpu_custom_call.1} parent=5 // pred_fallthru
        _
      %p206 = scmp.le.s32.totalorder 1, %s18
      %p207 = scmp.lt.s32.totalorder %s18, 5
      %p208 = pnand %p206, %p207
      %p209 = pneg %p208
      // Predicated region
      $region37: #{tpu_custom_call.1} parent=5 // pred_check
        _
      $region38: #{tpu_custom_call.1} parent=5 // pred_check_branch
        %211 = sbr.rel (%p208) target = $region40
      $region39: #{tpu_custom_call.1} parent=5 // pred_region
        %s212 = ssub.s32 %s18, 1
        %s213 = sand.u32 %s31, 1
        %s214 = scalar_lea.sflag [#allocation4], %s213
        %s215 = sand.u32 %s31, 1
        %s216 = smul.addr %s215, 128
        %s217 = scalar_lea.vmem [#allocation3], %s216
        // Predicated region
        $region41: #{tpu_custom_call.1} parent=39 // pred_check
          %p218 = pneg %p44
        $region42: #{tpu_custom_call.1} parent=39 // pred_check_branch
          %220 = sbr.rel (%p218) target = $region44
        $region43: #{tpu_custom_call.1} parent=39 // pred_region
          %221 = dma.done %s214, 2048
        $region44: #{tpu_custom_call.1} parent=39 // pred_fallthru
          _
        %s222 = sand.u32 %s31, 1
        %s223 = scalar_lea.sflag [#allocation4], %s222
        %s224 = sand.u32 %s31, 1
        %s225 = smul.addr %s224, 128
        %s226 = scalar_lea.vmem [#allocation3], %s225
        %p227 = pneg %p44
        %p228 = pneg %p41
        %p229 = pneg %p65
        %p230 = pneg %p62
        %p231 = pneg %p86
        %p232 = pneg %p83
        %p233 = pneg %p107
        %p234 = pneg %p104
        %p235 = pneg %p128
        %p236 = pneg %p125
        %p237 = pneg %p154
        %p238 = pneg %p151
        %s239 = sand.u32 %s141, 1
        %s240 = scalar_lea.sflag [#allocation5], %s239
        %s241 = sand.u32 %s141, 1
        %s242 = smul.addr %s241, 8
        %s243 = scalar_lea.vmem [#allocation6], %s242
        %s244 = smul.u32 16, %s23
        %v245 = vld [vmem:[%s217] sm:$0xff]
        %v246 = vld [vmem:[%s217 + $0x8] sm:$0xff]
        %v247 = vld [vmem:[%s217 + $0x10] sm:$0xff]
        %v248 = vld [vmem:[%s217 + $0x18] sm:$0xff]
        %v249 = vld [vmem:[%s217 + $0x20] sm:$0xff]
        %v250 = vld [vmem:[%s217 + $0x28] sm:$0xff]
        %v251 = vld [vmem:[%s217 + $0x30] sm:$0xff]
        %v252 = vld [vmem:[%s217 + $0x38] sm:$0xff]
        %v253 = vld [vmem:[%s217 + $0x40] sm:$0xff]
        %v254 = vld [vmem:[%s217 + $0x48] sm:$0xff]
        %v255 = vld [vmem:[%s217 + $0x50] sm:$0xff]
        %v256 = vld [vmem:[%s217 + $0x58] sm:$0xff]
        %v257 = vld [vmem:[%s217 + $0x60] sm:$0xff]
        %v258 = vld [vmem:[%s217 + $0x68] sm:$0xff]
        %v259 = vld [vmem:[%s217 + $0x70] sm:$0xff]
        %v260 = vld [vmem:[%s217 + $0x78] sm:$0xff]
        %v261 = vld [vmem:[%s1] sm:$0xff]
        %v262 = vld [vmem:[%s1 + $0x8] sm:$0xff]
        %v263 = vld [vmem:[%s1 + $0x10] sm:$0xff]
        %v264 = vld [vmem:[%s1 + $0x18] sm:$0xff]
        %v265 = vld [vmem:[%s1 + $0x20] sm:$0xff]
        %v266 = vld [vmem:[%s1 + $0x28] sm:$0xff]
        %v267 = vld [vmem:[%s1 + $0x30] sm:$0xff]
        %v268 = vld [vmem:[%s1 + $0x38] sm:$0xff]
        %v269 = vld [vmem:[%s1 + $0x40] sm:$0xff]
        %v270 = vld [vmem:[%s1 + $0x48] sm:$0xff]
        %v271 = vld [vmem:[%s1 + $0x50] sm:$0xff]
        %v272 = vld [vmem:[%s1 + $0x58] sm:$0xff]
        %v273 = vld [vmem:[%s1 + $0x60] sm:$0xff]
        %v274 = vld [vmem:[%s1 + $0x68] sm:$0xff]
        %v275 = vld [vmem:[%s1 + $0x70] sm:$0xff]
        %v276 = vld [vmem:[%s1 + $0x78] sm:$0xff]
        %v277 = vld [vmem:[%s2] sm:$0x1]
        %v279 = vlaneseq
        %v280 = vshrl.u32 %v279, 7
        %v281 = vsub.s32 0, %v280
        %v282 = vrot.slane %v277, %v281
        %284 = vmatprep.subr.mxu0 0.0
        %285 = vmatpush1.msra.mxu0 %v261
        %286 = vmatprep.subr.mxu0 0.0
        %287 = vmatpush1.msra.mxu0 %v262
        %288 = vmatprep.subr.mxu0 0.0
        %289 = vmatpush1.msra.mxu0 %v263
        %290 = vmatprep.subr.mxu0 0.0
        %291 = vmatpush1.msra.mxu0 %v264
        %292 = vmatprep.subr.mxu0 0.0
        %293 = vmatpush1.msra.mxu0 %v265
        %294 = vmatprep.subr.mxu0 0.0
        %295 = vmatpush1.msra.mxu0 %v266
        %296 = vmatprep.subr.mxu0 0.0
        %297 = vmatpush1.msra.mxu0 %v267
        %298 = vmatprep.subr.mxu0 0.0
        %299 = vmatpush1.msra.mxu0 %v268
        %300 = vmatprep.subr.mxu0 0.0
        %301 = vmatpush1.msra.mxu0 %v269
        %302 = vmatprep.subr.mxu0 0.0
        %303 = vmatpush1.msra.mxu0 %v270
        %304 = vmatprep.subr.mxu0 0.0
        %305 = vmatpush1.msra.mxu0 %v271
        %306 = vmatprep.subr.mxu0 0.0
        %307 = vmatpush1.msra.mxu0 %v272
        %308 = vmatprep.subr.mxu0 0.0
        %309 = vmatpush1.msra.mxu0 %v273
        %310 = vmatprep.subr.mxu0 0.0
        %311 = vmatpush1.msra.mxu0 %v274
        %312 = vmatprep.subr.mxu0 0.0
        %313 = vmatpush1.msra.mxu0 %v275
        %314 = vmatprep.subr.mxu0 0.0
        %315 = vmatpush1.msra.mxu0 %v276
        %316 = vmatprep.subr.mxu0 0.0
        %317 = vmatpush1.msra.mxu0 0.0
        %318 = vmatprep.subr.mxu0 0.0
        %319 = vmatpush1.msra.mxu0 0.0
        %320 = vmatprep.subr.mxu0 0.0
        %321 = vmatpush1.msra.mxu0 0.0
        %322 = vmatprep.subr.mxu0 0.0
        %323 = vmatpush1.msra.mxu0 0.0
        %324 = vmatprep.subr.mxu0 0.0
        %325 = vmatpush1.msra.mxu0 0.0
        %326 = vmatprep.subr.mxu0 0.0
        %327 = vmatpush1.msra.mxu0 0.0
        %328 = vmatprep.subr.mxu0 0.0
        %329 = vmatpush1.msra.mxu0 0.0
        %330 = vmatprep.subr.mxu0 0.0
        %331 = vmatpush1.msra.mxu0 0.0
        %332 = vmatprep.subr.mxu0 0.0
        %333 = vmatpush1.msra.mxu0 0.0
        %334 = vmatprep.subr.mxu0 0.0
        %335 = vmatpush1.msra.mxu0 0.0
        %336 = vmatprep.subr.mxu0 0.0
        %337 = vmatpush1.msra.mxu0 0.0
        %338 = vmatprep.subr.mxu0 0.0
        %339 = vmatpush1.msra.mxu0 0.0
        %340 = vmatprep.subr.mxu0 0.0
        %341 = vmatpush1.msra.mxu0 0.0
        %342 = vmatprep.subr.mxu0 0.0
        %343 = vmatpush1.msra.mxu0 0.0
        %344 = vmatprep.subr.mxu0 0.0
        %345 = vmatpush1.msra.mxu0 0.0
        %346 = vmatprep.subr.mxu0 0.0
        %347 = vmatpush1.msra.mxu0 0.0
        %348 = vmatprep.mubr.f32.mxu0 0.0
        %349 = vmatmul.mubr.f32.gmra.mrb[0].mxu0 %v245
        %v350 = vpop.f32.mrb[0].mxu0
        %v351 = vadd.f32 %v282, %v350
        %v352 = vpop.f32.mrb[0].mxu0
        %353 = vmatprep.mubr.f32.mxu0 0.0
        %354 = vmatmul.mubr.f32.gmra.mrb[0].mxu0 %v246
        %v355 = vpop.f32.mrb[0].mxu0
        %v356 = vadd.f32 %v282, %v355
        %v357 = vpop.f32.mrb[0].mxu0
        %358 = vmatprep.mubr.f32.mxu0 0.0
        %359 = vmatmul.mubr.f32.gmra.mrb[0].mxu0 %v247
        %v360 = vpop.f32.mrb[0].mxu0
        %v361 = vadd.f32 %v282, %v360
        %v362 = vpop.f32.mrb[0].mxu0
        %363 = vmatprep.mubr.f32.mxu0 0.0
        %364 = vmatmul.mubr.f32.gmra.mrb[0].mxu0 %v248
        %v365 = vpop.f32.mrb[0].mxu0
        %v366 = vadd.f32 %v282, %v365
        %v367 = vpop.f32.mrb[0].mxu0
        %368 = vmatprep.mubr.f32.mxu0 0.0
        %369 = vmatmul.mubr.f32.gmra.mrb[0].mxu0 %v249
        %v370 = vpop.f32.mrb[0].mxu0
        %v371 = vadd.f32 %v282, %v370
        %v372 = vpop.f32.mrb[0].mxu0
        %373 = vmatprep.mubr.f32.mxu0 0.0
        %374 = vmatmul.mubr.f32.gmra.mrb[0].mxu0 %v250
        %v375 = vpop.f32.mrb[0].mxu0
        %v376 = vadd.f32 %v282, %v375
        %v377 = vpop.f32.mrb[0].mxu0
        %378 = vmatprep.mubr.f32.mxu0 0.0
        %379 = vmatmul.mubr.f32.gmra.mrb[0].mxu0 %v251
        %v380 = vpop.f32.mrb[0].mxu0
        %v381 = vadd.f32 %v282, %v380
        %v382 = vpop.f32.mrb[0].mxu0
        %383 = vmatprep.mubr.f32.mxu0 0.0
        %384 = vmatmul.mubr.f32.gmra.mrb[0].mxu0 %v252
        %v385 = vpop.f32.mrb[0].mxu0
        %v386 = vadd.f32 %v282, %v385
        %v387 = vpop.f32.mrb[0].mxu0
        %388 = vmatprep.mubr.f32.mxu0 0.0
        %389 = vmatmul.mubr.f32.gmra.mrb[0].mxu0 %v253
        %v390 = vpop.f32.mrb[0].mxu0
        %v391 = vadd.f32 %v282, %v390
        %v392 = vpop.f32.mrb[0].mxu0
        %393 = vmatprep.mubr.f32.mxu0 0.0
        %394 = vmatmul.mubr.f32.gmra.mrb[0].mxu0 %v254
        %v395 = vpop.f32.mrb[0].mxu0
        %v396 = vadd.f32 %v282, %v395
        %v397 = vpop.f32.mrb[0].mxu0
        %398 = vmatprep.mubr.f32.mxu0 0.0
        %399 = vmatmul.mubr.f32.gmra.mrb[0].mxu0 %v255
        %v400 = vpop.f32.mrb[0].mxu0
        %v401 = vadd.f32 %v282, %v400
        %v402 = vpop.f32.mrb[0].mxu0
        %403 = vmatprep.mubr.f32.mxu0 0.0
        %404 = vmatmul.mubr.f32.gmra.mrb[0].mxu0 %v256
        %v405 = vpop.f32.mrb[0].mxu0
        %v406 = vadd.f32 %v282, %v405
        %v407 = vpop.f32.mrb[0].mxu0
        %408 = vmatprep.mubr.f32.mxu0 0.0
        %409 = vmatmul.mubr.f32.gmra.mrb[0].mxu0 %v257
        %v410 = vpop.f32.mrb[0].mxu0
        %v411 = vadd.f32 %v282, %v410
        %v412 = vpop.f32.mrb[0].mxu0
        %413 = vmatprep.mubr.f32.mxu0 0.0
        %414 = vmatmul.mubr.f32.gmra.mrb[0].mxu0 %v258
        %v415 = vpop.f32.mrb[0].mxu0
        %v416 = vadd.f32 %v282, %v415
        %v417 = vpop.f32.mrb[0].mxu0
        %418 = vmatprep.mubr.f32.mxu0 0.0
        %419 = vmatmul.mubr.f32.gmra.mrb[0].mxu0 %v259
        %v420 = vpop.f32.mrb[0].mxu0
        %v421 = vadd.f32 %v282, %v420
        %v422 = vpop.f32.mrb[0].mxu0
        %423 = vmatprep.mubr.f32.mxu0 0.0
        %424 = vmatmul.mubr.f32.gmra.mrb[0].mxu0 %v260
        %v425 = vpop.f32.mrb[0].mxu0
        %v426 = vadd.f32 %v282, %v425
        %v427 = vpop.f32.mrb[0].mxu0
        %428 = vdwg.mxu0
        %v429 = vtanh.pop %v351
        %v430 = vtanh.pop %v356
        %v431 = vtanh.pop %v361
        %v432 = vtanh.pop %v366
        %v433 = vtanh.pop %v371
        %v434 = vtanh.pop %v376
        %v435 = vtanh.pop %v381
        %v436 = vtanh.pop %v386
        %v437 = vtanh.pop %v391
        %v438 = vtanh.pop %v396
        %v439 = vtanh.pop %v401
        %v440 = vtanh.pop %v406
        %v441 = vtanh.pop %v411
        %v442 = vtanh.pop %v416
        %v443 = vtanh.pop %v421
        %v444 = vtanh.pop %v426
        %v445 = vld [vmem:[%s3] sm:$0xff]
        %v446 = vld [vmem:[%s3 + $0x8] sm:$0xff]
        %v447 = vld [vmem:[%s3 + $0x10] sm:$0xff]
        %v448 = vld [vmem:[%s3 + $0x18] sm:$0xff]
        %v449 = vld [vmem:[%s3 + $0x20] sm:$0xff]
        %v450 = vld [vmem:[%s3 + $0x28] sm:$0xff]
        %v451 = vld [vmem:[%s3 + $0x30] sm:$0xff]
        %v452 = vld [vmem:[%s3 + $0x38] sm:$0xff]
        %v453 = vld [vmem:[%s3 + $0x40] sm:$0xff]
        %v454 = vld [vmem:[%s3 + $0x48] sm:$0xff]
        %v455 = vld [vmem:[%s3 + $0x50] sm:$0xff]
        %v456 = vld [vmem:[%s3 + $0x58] sm:$0xff]
        %v457 = vld [vmem:[%s3 + $0x60] sm:$0xff]
        %v458 = vld [vmem:[%s3 + $0x68] sm:$0xff]
        %v459 = vld [vmem:[%s3 + $0x70] sm:$0xff]
        %v460 = vld [vmem:[%s3 + $0x78] sm:$0xff]
        %461 = vmatprep.subr.mxu0 0.0
        %462 = vmatpush1.msra.mxu0 %v445
        %463 = vmatprep.subr.mxu0 0.0
        %464 = vmatpush1.msra.mxu0 %v446
        %465 = vmatprep.subr.mxu0 0.0
        %466 = vmatpush1.msra.mxu0 %v447
        %467 = vmatprep.subr.mxu0 0.0
        %468 = vmatpush1.msra.mxu0 %v448
        %469 = vmatprep.subr.mxu0 0.0
        %470 = vmatpush1.msra.mxu0 %v449
        %471 = vmatprep.subr.mxu0 0.0
        %472 = vmatpush1.msra.mxu0 %v450
        %473 = vmatprep.subr.mxu0 0.0
        %474 = vmatpush1.msra.mxu0 %v451
        %475 = vmatprep.subr.mxu0 0.0
        %476 = vmatpush1.msra.mxu0 %v452
        %477 = vmatprep.subr.mxu0 0.0
        %478 = vmatpush1.msra.mxu0 %v453
        %479 = vmatprep.subr.mxu0 0.0
        %480 = vmatpush1.msra.mxu0 %v454
        %481 = vmatprep.subr.mxu0 0.0
        %482 = vmatpush1.msra.mxu0 %v455
        %483 = vmatprep.subr.mxu0 0.0
        %484 = vmatpush1.msra.mxu0 %v456
        %485 = vmatprep.subr.mxu0 0.0
        %486 = vmatpush1.msra.mxu0 %v457
        %487 = vmatprep.subr.mxu0 0.0
        %488 = vmatpush1.msra.mxu0 %v458
        %489 = vmatprep.subr.mxu0 0.0
        %490 = vmatpush1.msra.mxu0 %v459
        %491 = vmatprep.subr.mxu0 0.0
        %492 = vmatpush1.msra.mxu0 %v460
        %493 = vmatprep.subr.mxu0 0.0
        %494 = vmatpush1.msra.mxu0 0.0
        %495 = vmatprep.subr.mxu0 0.0
        %496 = vmatpush1.msra.mxu0 0.0
        %497 = vmatprep.subr.mxu0 0.0
        %498 = vmatpush1.msra.mxu0 0.0
        %499 = vmatprep.subr.mxu0 0.0
        %500 = vmatpush1.msra.mxu0 0.0
        %501 = vmatprep.subr.mxu0 0.0
        %502 = vmatpush1.msra.mxu0 0.0
        %503 = vmatprep.subr.mxu0 0.0
        %504 = vmatpush1.msra.mxu0 0.0
        %505 = vmatprep.subr.mxu0 0.0
        %506 = vmatpush1.msra.mxu0 0.0
        %507 = vmatprep.subr.mxu0 0.0
        %508 = vmatpush1.msra.mxu0 0.0
        %509 = vmatprep.subr.mxu0 0.0
        %510 = vmatpush1.msra.mxu0 0.0
        %511 = vmatprep.subr.mxu0 0.0
        %512 = vmatpush1.msra.mxu0 0.0
        %513 = vmatprep.subr.mxu0 0.0
        %514 = vmatpush1.msra.mxu0 0.0
        %515 = vmatprep.subr.mxu0 0.0
        %516 = vmatpush1.msra.mxu0 0.0
        %517 = vmatprep.subr.mxu0 0.0
        %518 = vmatpush1.msra.mxu0 0.0
        %519 = vmatprep.subr.mxu0 0.0
        %520 = vmatpush1.msra.mxu0 0.0
        %521 = vmatprep.subr.mxu0 0.0
        %522 = vmatpush1.msra.mxu0 0.0
        %523 = vmatprep.subr.mxu0 0.0
        %524 = vmatpush1.msra.mxu0 0.0
        %525 = vmatprep.mubr.f32.mxu0 0.0
        %526 = vmatmul.mubr.f32.gmra.mrb[0].mxu0 %v429
        %v527 = vpop.f32.mrb[0].mxu0
        %v528 = vadd.f32 0.0, %v527
        %v529 = vpop.f32.mrb[0].mxu0
        %530 = vmatprep.mubr.f32.mxu0 0.0
        %531 = vmatmul.mubr.f32.gmra.mrb[0].mxu0 %v430
        %v532 = vpop.f32.mrb[0].mxu0
        %v533 = vadd.f32 0.0, %v532
        %v534 = vpop.f32.mrb[0].mxu0
        %535 = vmatprep.mubr.f32.mxu0 0.0
        %536 = vmatmul.mubr.f32.gmra.mrb[0].mxu0 %v431
        %v537 = vpop.f32.mrb[0].mxu0
        %v538 = vadd.f32 0.0, %v537
        %v539 = vpop.f32.mrb[0].mxu0
        %540 = vmatprep.mubr.f32.mxu0 0.0
        %541 = vmatmul.mubr.f32.gmra.mrb[0].mxu0 %v432
        %v542 = vpop.f32.mrb[0].mxu0
        %v543 = vadd.f32 0.0, %v542
        %v544 = vpop.f32.mrb[0].mxu0
        %545 = vmatprep.mubr.f32.mxu0 0.0
        %546 = vmatmul.mubr.f32.gmra.mrb[0].mxu0 %v433
        %v547 = vpop.f32.mrb[0].mxu0
        %v548 = vadd.f32 0.0, %v547
        %v549 = vpop.f32.mrb[0].mxu0
        %550 = vmatprep.mubr.f32.mxu0 0.0
        %551 = vmatmul.mubr.f32.gmra.mrb[0].mxu0 %v434
        %v552 = vpop.f32.mrb[0].mxu0
        %v553 = vadd.f32 0.0, %v552
        %v554 = vpop.f32.mrb[0].mxu0
        %555 = vmatprep.mubr.f32.mxu0 0.0
        %556 = vmatmul.mubr.f32.gmra.mrb[0].mxu0 %v435
        %v557 = vpop.f32.mrb[0].mxu0
        %v558 = vadd.f32 0.0, %v557
        %v559 = vpop.f32.mrb[0].mxu0
        %560 = vmatprep.mubr.f32.mxu0 0.0
        %561 = vmatmul.mubr.f32.gmra.mrb[0].mxu0 %v436
        %v562 = vpop.f32.mrb[0].mxu0
        %v563 = vadd.f32 0.0, %v562
        %v564 = vpop.f32.mrb[0].mxu0
        %565 = vmatprep.mubr.f32.mxu0 0.0
        %566 = vmatmul.mubr.f32.gmra.mrb[0].mxu0 %v437
        %v567 = vpop.f32.mrb[0].mxu0
        %v568 = vadd.f32 0.0, %v567
        %v569 = vpop.f32.mrb[0].mxu0
        %570 = vmatprep.mubr.f32.mxu0 0.0
        %571 = vmatmul.mubr.f32.gmra.mrb[0].mxu0 %v438
        %v572 = vpop.f32.mrb[0].mxu0
        %v573 = vadd.f32 0.0, %v572
        %v574 = vpop.f32.mrb[0].mxu0
        %575 = vmatprep.mubr.f32.mxu0 0.0
        %576 = vmatmul.mubr.f32.gmra.mrb[0].mxu0 %v439
        %v577 = vpop.f32.mrb[0].mxu0
        %v578 = vadd.f32 0.0, %v577
        %v579 = vpop.f32.mrb[0].mxu0
        %580 = vmatprep.mubr.f32.mxu0 0.0
        %581 = vmatmul.mubr.f32.gmra.mrb[0].mxu0 %v440
        %v582 = vpop.f32.mrb[0].mxu0
        %v583 = vadd.f32 0.0, %v582
        %v584 = vpop.f32.mrb[0].mxu0
        %585 = vmatprep.mubr.f32.mxu0 0.0
        %586 = vmatmul.mubr.f32.gmra.mrb[0].mxu0 %v441
        %v587 = vpop.f32.mrb[0].mxu0
        %v588 = vadd.f32 0.0, %v587
        %v589 = vpop.f32.mrb[0].mxu0
        %590 = vmatprep.mubr.f32.mxu0 0.0
        %591 = vmatmul.mubr.f32.gmra.mrb[0].mxu0 %v442
        %v592 = vpop.f32.mrb[0].mxu0
        %v593 = vadd.f32 0.0, %v592
        %v594 = vpop.f32.mrb[0].mxu0
        %595 = vmatprep.mubr.f32.mxu0 0.0
        %596 = vmatmul.mubr.f32.gmra.mrb[0].mxu0 %v443
        %v597 = vpop.f32.mrb[0].mxu0
        %v598 = vadd.f32 0.0, %v597
        %v599 = vpop.f32.mrb[0].mxu0
        %600 = vmatprep.mubr.f32.mxu0 0.0
        %601 = vmatmul.mubr.f32.gmra.mrb[0].mxu0 %v444
        %v602 = vpop.f32.mrb[0].mxu0
        %v603 = vadd.f32 0.0, %v602
        %v604 = vpop.f32.mrb[0].mxu0
        %605 = vdwg.mxu0
        %606 = vxpose.xlu0.b32.start [1/16] %v528, 128
        %607 = vxpose.xlu0.b32.cont [2/16] %v533, 128
        %608 = vxpose.xlu0.b32.cont [3/16] %v538, 128
        %609 = vxpose.xlu0.b32.cont [4/16] %v543, 128
        %610 = vxpose.xlu0.b32.cont [5/16] %v548, 128
        %611 = vxpose.xlu0.b32.cont [6/16] %v553, 128
        %612 = vxpose.xlu0.b32.cont [7/16] %v558, 128
        %613 = vxpose.xlu0.b32.cont [8/16] %v563, 128
        %614 = vxpose.xlu0.b32.cont [9/16] %v568, 128
        %615 = vxpose.xlu0.b32.cont [10/16] %v573, 128
        %616 = vxpose.xlu0.b32.cont [11/16] %v578, 128
        %617 = vxpose.xlu0.b32.cont [12/16] %v583, 128
        %618 = vxpose.xlu0.b32.cont [13/16] %v588, 128
        %619 = vxpose.xlu0.b32.cont [14/16] %v593, 128
        %620 = vxpose.xlu0.b32.cont [15/16] %v598, 128
        %621 = vxpose.xlu0.b32.end [16/16] %v603, 128
        %v622 = vpop.trf.xlu0
        %v623 = vpop.trf.xlu0
        %v624 = vpop.trf.xlu0
        %v625 = vpop.trf.xlu0
        %v626 = vpop.trf.xlu0
        %v627 = vpop.trf.xlu0
        %v628 = vpop.trf.xlu0
        %v629 = vpop.trf.xlu0
        %v630 = vpop.trf.xlu0
        %v631 = vpop.trf.xlu0
        %v632 = vpop.trf.xlu0
        %v633 = vpop.trf.xlu0
        %v634 = vpop.trf.xlu0
        %v635 = vpop.trf.xlu0
        %v636 = vpop.trf.xlu0
        %v637 = vpop.trf.xlu0
        %s638 = sld [smem:[#allocation2]]
        %v639 = vstv %s638
        %v640 = vadd.f32 %v622, %v639
        %v641 = vxor.u32 %v640, 2147483648
        %v642 = vmul.f32 %v641, 1.442695
        %v643 = vpow.pop %v642
        %v644 = vadd.f32 %v643, 1.0
        %v645 = vrcp.pop %v644
        %v646 = vmul.f32 1.0, %v645
        %647 = vst [vmem:[%s243] sm:$0xff] %v646
        %s648 = sand.u32 %s141, 1
        %s649 = scalar_lea.sflag [#allocation5], %s648
        %s650 = sand.u32 %s141, 1
        %s651 = smul.addr %s650, 8
        %s652 = scalar_lea.vmem [#allocation6], %s651
        // Predicated region
        $region45: #{tpu_custom_call.1} parent=39 // pred_check
          %p653 = pneg %p151
        $region46: #{tpu_custom_call.1} parent=39 // pred_check_branch
          %655 = sbr.rel (%p653) target = $region48
        $region47: #{tpu_custom_call.1} parent=39 // pred_region
          %s657 = ssub.s32 128, 128
          %658 = vsyncadd %s649, %s657
          %s659 = smul.addr %s23, 128
          %s660 = scalar_lea.hbm %s5, %s659
          %s662 = sshll.u32 %s652, 4
          %s663 = int_to_ptr.vmem [resolvable:$true] %s662
          %665 = dma.vmem_to_hbm [thread:$0]  %s663, 128, %s660, %s649
        $region48: #{tpu_custom_call.1} parent=39 // pred_fallthru
          _
      $region40: #{tpu_custom_call.1} parent=5 // pred_fallthru
        _
      %p666 = scmp.le.s32.totalorder 2, %s18
      // Predicated region
      $region49: #{tpu_custom_call.1} parent=5 // pred_check
        %p667 = pneg %p666
      $region50: #{tpu_custom_call.1} parent=5 // pred_check_branch
        %669 = sbr.rel (%p667) target = $region52
      $region51: #{tpu_custom_call.1} parent=5 // pred_region
        %s670 = ssub.s32 %s18, 2
        // Predicated region
        $region53: #{tpu_custom_call.1} parent=51 // pred_check
          %p671 = pneg %p157
        $region54: #{tpu_custom_call.1} parent=51 // pred_check_branch
          %673 = sbr.rel (%p671) target = $region56
        $region55: #{tpu_custom_call.1} parent=51 // pred_region
          %s674 = sand.u32 %s142, 1
          %s675 = scalar_lea.sflag [#allocation5], %s674
          %s676 = sand.u32 %s142, 1
          %s677 = smul.addr %s676, 8
          %s678 = scalar_lea.vmem [#allocation6], %s677
          %679 = dma.done %s675, 128
        $region56: #{tpu_custom_call.1} parent=51 // pred_fallthru
          _
      $region52: #{tpu_custom_call.1} parent=5 // pred_fallthru
        _
    $region6: #{tpu_custom_call.1} parent=1 // loop_footer
      %s22 = sadd.s32 1, %s18
    $region7: #{tpu_custom_call.1} parent=1 // loop_footer_branch
      %17 = sbr.rel target = $region3
    $region8: #{tpu_custom_call.1} parent=1 // loop_exit
      _
    %680 = vsyncpa [#allocation4], 1
    %s681 = scalar_lea.sflag [#allocation4], 1
    %682 = vsyncpa %s681, 1
    %683 = vsyncpa [#allocation5], 1
    %s684 = scalar_lea.sflag [#allocation5], 1
    %685 = vsyncpa %s684, 1

</llo_original>
